<compile_context>
chip_gen: v5e
topology: v5e:2x2
jax: 0.10.0
libtpu: 0.0.40
codegen_flags: <defaults>
</compile_context>

<pallas_src>
import functools

import jax
import jax.numpy as jnp
from jax.experimental import pallas as pl
from jax.experimental.pallas import tpu as pltpu

LANE = 128      # lane width: weight/bias/output feature dims padded to multiples of this
SUBLANE = 8     # sublane granularity for the (f32) batch tile


def _round_up(n, m):
    return ((n + m - 1) // m) * m


def _cdiv(a, b):
    return -(-a // b)


@functools.lru_cache(maxsize=1)
def _num_tensorcores():
    """Best-effort detection of TensorCores per chip (v7x has 2, v5e/v6e have 1)."""
    try:
        kind = jax.devices()[0].device_kind.lower()
    except Exception:
        return 1
    return 2 if "v7" in kind else 1


def _choose_tiling(batch, block_b, n_cores):
    """Pick (tile_b, n_tiles, padded_batch) minimizing padding and per-step overhead."""
    batch8 = _round_up(batch, SUBLANE)
    n_tiles = max(1, _cdiv(batch8, block_b))
    if n_cores > 1:
        # At least one tile per core and a core-balanced tile count on dual-TC chips.
        n_tiles = _round_up(max(n_tiles, n_cores), n_cores)
    tile_b = _round_up(_cdiv(batch8, n_tiles), SUBLANE)
    batch_p = n_tiles * tile_b
    return tile_b, n_tiles, batch_p


def mlp_kernel(x_ref, w1_ref, b1_ref, w2_ref, b2_ref, w3_ref, b3_ref, o_ref):
    # Cast x to bf16 in-kernel (VPU slot is otherwise idle here) for the MXU.
    x = x_ref[...].astype(jnp.bfloat16)
    # Layer 1: bf16 MXU, f32 accumulate; bias + ReLU in f32.
    h1 = jnp.dot(x, w1_ref[...], preferred_element_type=jnp.float32)
    h1 = jnp.maximum(h1 + b1_ref[...], 0.0)
    # Layer 2.  (h is re-quantized to bf16 between layers: documented precision trade,
    # covered by the loosened tolerance below.)
    h2 = jnp.dot(h1.astype(jnp.bfloat16), w2_ref[...],
                 preferred_element_type=jnp.float32)
    h2 = jnp.maximum(h2 + b2_ref[...], 0.0)
    # Layer 3: logits, no activation.
    out = jnp.dot(h2.astype(jnp.bfloat16), w3_ref[...],
                  preferred_element_type=jnp.float32)
    o_ref[...] = (out + b3_ref[...]).astype(o_ref.dtype)


@functools.partial(jax.jit, static_argnames=("num_classes", "block_b", "n_cores"))
def _forward_impl(x, pp, *, num_classes, block_b, n_cores):
    batch, in_sz = x.shape
    cls_p = pp["w3"].shape[1]

    tile_b, n_tiles, batch_p = _choose_tiling(batch, block_b, n_cores)

    # Only the batch dim may need (tiny) padding; features stay at their logical width.
    x_in = x if batch_p == batch else jnp.pad(x, ((0, batch_p - batch), (0, 0)))

    # Weights/biases: full-extent block pinned to block (0,0) for every batch tile,
    # so they are DMA'd into VMEM once and stay resident across the grid.
    resident = lambda a: pl.BlockSpec(a.shape, lambda i: (0, 0))

    out_p = pl.pallas_call(
        mlp_kernel,
        out_shape=jax.ShapeDtypeStruct((batch_p, cls_p), jnp.float32),
        grid=(n_tiles,),
        in_specs=[
            # x: tiled over batch; last dim == full array dim (legal even if < 128).
            pl.BlockSpec((tile_b, in_sz), lambda i: (i, 0)),
            resident(pp["w1"]), resident(pp["b1"]),
            resident(pp["w2"]), resident(pp["b2"]),
            resident(pp["w3"]), resident(pp["b3"]),
        ],
        out_specs=pl.BlockSpec((tile_b, cls_p), lambda i: (i, 0)),
        compiler_params=pltpu.CompilerParams(
            dimension_semantics=("parallel",)),  # shards batch tiles across TCs on v7x
    )(x_in, pp["w1"], pp["b1"], pp["w2"], pp["b2"], pp["w3"], pp["b3"])

    # Strip batch + class padding back to logical shape.
    return out_p[:batch, :num_classes]


def neural_net_forward(x, padded_params, *, num_classes, block_b=1024):
    """Forward pass.  `padded_params` must come from prepare_params()."""
    return _forward_impl(x, padded_params, num_classes=num_classes,
                         block_b=block_b, n_cores=_num_tensorcores())


def prepare_params(params):
    """One-time step: lane-pad feature dims to multiples of 128 and cast weights to bf16.

    Zero-padded weight rows/cols + zero bias padding keep the math exactly equivalent
    (padded hidden units compute relu(0) = 0 and feed zero weights downstream).
    """
    w1, b1 = params["w1"], params["b1"]
    w2, b2 = params["w2"], params["b2"]
    w3, b3 = params["w3"], params["b3"]
    in_sz, hid = w1.shape
    ncls = w3.shape[1]
    hid_p = _round_up(hid, LANE)
    cls_p = _round_up(ncls, LANE)

    pad2 = lambda a, r, c: jnp.pad(a, ((0, r - a.shape[0]), (0, c - a.shape[1])))
    return {
        "w1": pad2(w1, in_sz, hid_p).astype(jnp.bfloat16),   # K dim stays logical in_sz
        "b1": pad2(b1, 1, hid_p).astype(jnp.float32),
        "w2": pad2(w2, hid_p, hid_p).astype(jnp.bfloat16),
        "b2": pad2(b2, 1, hid_p).astype(jnp.float32),
        "w3": pad2(w3, hid_p, cls_p).astype(jnp.bfloat16),
        "b3": pad2(b3, 1, cls_p).astype(jnp.float32),
    }


def init_params(key, input_size, hidden_size, num_classes):
    """Mimics nn.Linear's uniform(-1/sqrt(fan_in), 1/sqrt(fan_in)) init.

    PyTorch stores weight as (out, in); we store the transposed (in, out) form
    directly since that's what the kernel consumes (x @ W + b).
    """
    ks = jax.random.split(key, 6)

    def linear(kw, kb, fan_in, fan_out):
        bound = 1.0 / jnp.sqrt(float(fan_in))
        w = jax.random.uniform(kw, (fan_in, fan_out), jnp.float32, -bound, bound)
        b = jax.random.uniform(kb, (1, fan_out), jnp.float32, -bound, bound)
        return w, b

    w1, b1 = linear(ks[0], ks[1], input_size, hidden_size)
    w2, b2 = linear(ks[2], ks[3], hidden_size, hidden_size)
    w3, b3 = linear(ks[4], ks[5], hidden_size, num_classes)
    return {"w1": w1, "b1": b1, "w2": w2, "b2": b2, "w3": w3, "b3": b3}


if __name__ == "__main__":
    # Logical model sizes stay small (bag-of-words chatbot MLP); batch is 256 so MXU
    # rows fill and per-launch overhead amortizes.  Tiling (1 tile on v5e/v6e, 2 on
    # v7x) is chosen automatically from the detected chip generation.
    batch, input_size, hidden_size, num_classes = 256, 64, 32, 16

    key = jax.random.PRNGKey(0)
    k_x, k_p = jax.random.split(key)
    x = jax.random.normal(k_x, (batch, input_size), jnp.float32)
    params = init_params(k_p, input_size, hidden_size, num_classes)
    padded_params = prepare_params(params)          # one-time pad + bf16 cast

    out = neural_net_forward(x, padded_params, num_classes=num_classes)
    out = jax.block_until_ready(out)

    # Plain-JAX f32 reference of the same forward pass (kernel uses bf16 MXU inputs
    # with f32 accumulation, so tolerance is loosened accordingly).
    def ref(xv, p):
        h = jnp.maximum(xv @ p["w1"] + p["b1"], 0.0)
        h = jnp.maximum(h @ p["w2"] + p["b2"], 0.0)
        return h @ p["w3"] + p["b3"]

    expected = ref(x, params)
    assert out.shape == (batch, num_classes), out.shape
    assert jnp.allclose(out, expected, atol=5e-2, rtol=5e-2), (
        float(jnp.max(jnp.abs(out - expected))))

    print("KERNEL_OK")
</pallas_src>

<mosaic_0001>
module attributes {stable_mosaic.version = 11 : i64} {
  func.func @mlp_kernel(%arg0: i32, %arg1: memref<256x64xf32, #tpu.memory_space<vmem>>, %arg2: memref<64x128xbf16, #tpu.memory_space<vmem>>, %arg3: memref<1x128xf32, #tpu.memory_space<vmem>>, %arg4: memref<128x128xbf16, #tpu.memory_space<vmem>>, %arg5: memref<1x128xf32, #tpu.memory_space<vmem>>, %arg6: memref<128x128xbf16, #tpu.memory_space<vmem>>, %arg7: memref<1x128xf32, #tpu.memory_space<vmem>>, %arg8: memref<256x128xf32, #tpu.memory_space<vmem>>) attributes {dimension_semantics = [#tpu.dimension_semantics<parallel>], iteration_bounds = array<i64: 1>, scalar_prefetch = 0 : i64, scratch_operands = 0 : i64, tpu.core_type = #tpu.core_type<tc>, window_params = [{transform_indices = @transform_0, window_bounds = array<i64: 256, 64>}, {pipeline_mode = #tpu.pipeline_mode<synchronous>, transform_indices = @transform_1, window_bounds = array<i64: 64, 128>}, {pipeline_mode = #tpu.pipeline_mode<synchronous>, transform_indices = @transform_2, window_bounds = array<i64: 1, 128>}, {pipeline_mode = #tpu.pipeline_mode<synchronous>, transform_indices = @transform_3, window_bounds = array<i64: 128, 128>}, {pipeline_mode = #tpu.pipeline_mode<synchronous>, transform_indices = @transform_4, window_bounds = array<i64: 1, 128>}, {pipeline_mode = #tpu.pipeline_mode<synchronous>, transform_indices = @transform_5, window_bounds = array<i64: 128, 128>}, {pipeline_mode = #tpu.pipeline_mode<synchronous>, transform_indices = @transform_6, window_bounds = array<i64: 1, 128>}, {transform_indices = @transform_7, window_bounds = array<i64: 256, 128>}]} {
    %c0 = arith.constant 0 : index
    %c0_0 = arith.constant 0 : index
    %0 = vector.load %arg1[%c0, %c0_0] : memref<256x64xf32, #tpu.memory_space<vmem>>, vector<256x64xf32>
    %1 = arith.truncf %0 : vector<256x64xf32> to vector<256x64xbf16>
    %c0_1 = arith.constant 0 : index
    %c0_2 = arith.constant 0 : index
    %2 = vector.load %arg2[%c0_1, %c0_2] : memref<64x128xbf16, #tpu.memory_space<vmem>>, vector<64x128xbf16>
    %cst = arith.constant dense<0.000000e+00> : vector<256x128xf32>
    %3 = tpu.matmul %1, %2, %cst {dimension_numbers = #tpu.dot_dimension_numbers<[1], [0], [0], [1], [0, 0, 1, 1], [], []>} : vector<256x64xbf16>, vector<64x128xbf16>, vector<256x128xf32> -> vector<256x128xf32>
    %c0_3 = arith.constant 0 : index
    %c0_4 = arith.constant 0 : index
    %4 = vector.load %arg3[%c0_3, %c0_4] : memref<1x128xf32, #tpu.memory_space<vmem>>, vector<1x128xf32>
    %5 = vector.broadcast %4 : vector<1x128xf32> to vector<256x128xf32>
    %6 = arith.addf %3, %5 : vector<256x128xf32>
    %cst_5 = arith.constant 0.000000e+00 : f32
    %7 = vector.broadcast %cst_5 : f32 to vector<256x128xf32>
    %8 = arith.maximumf %6, %7 : vector<256x128xf32>
    %9 = arith.truncf %8 : vector<256x128xf32> to vector<256x128xbf16>
    %c0_6 = arith.constant 0 : index
    %c0_7 = arith.constant 0 : index
    %10 = vector.load %arg4[%c0_6, %c0_7] : memref<128x128xbf16, #tpu.memory_space<vmem>>, vector<128x128xbf16>
    %cst_8 = arith.constant dense<0.000000e+00> : vector<256x128xf32>
    %11 = tpu.matmul %9, %10, %cst_8 {dimension_numbers = #tpu.dot_dimension_numbers<[1], [0], [0], [1], [0, 0, 1, 1], [], []>} : vector<256x128xbf16>, vector<128x128xbf16>, vector<256x128xf32> -> vector<256x128xf32>
    %c0_9 = arith.constant 0 : index
    %c0_10 = arith.constant 0 : index
    %12 = vector.load %arg5[%c0_9, %c0_10] : memref<1x128xf32, #tpu.memory_space<vmem>>, vector<1x128xf32>
    %13 = vector.broadcast %12 : vector<1x128xf32> to vector<256x128xf32>
    %14 = arith.addf %11, %13 : vector<256x128xf32>
    %cst_11 = arith.constant 0.000000e+00 : f32
    %15 = vector.broadcast %cst_11 : f32 to vector<256x128xf32>
    %16 = arith.maximumf %14, %15 : vector<256x128xf32>
    %17 = arith.truncf %16 : vector<256x128xf32> to vector<256x128xbf16>
    %c0_12 = arith.constant 0 : index
    %c0_13 = arith.constant 0 : index
    %18 = vector.load %arg6[%c0_12, %c0_13] : memref<128x128xbf16, #tpu.memory_space<vmem>>, vector<128x128xbf16>
    %cst_14 = arith.constant dense<0.000000e+00> : vector<256x128xf32>
    %19 = tpu.matmul %17, %18, %cst_14 {dimension_numbers = #tpu.dot_dimension_numbers<[1], [0], [0], [1], [0, 0, 1, 1], [], []>} : vector<256x128xbf16>, vector<128x128xbf16>, vector<256x128xf32> -> vector<256x128xf32>
    %c0_15 = arith.constant 0 : index
    %c0_16 = arith.constant 0 : index
    %20 = vector.load %arg7[%c0_15, %c0_16] : memref<1x128xf32, #tpu.memory_space<vmem>>, vector<1x128xf32>
    %21 = vector.broadcast %20 : vector<1x128xf32> to vector<256x128xf32>
    %22 = arith.addf %19, %21 : vector<256x128xf32>
    %c0_17 = arith.constant 0 : index
    %c0_18 = arith.constant 0 : index
    %23 = vector.load %arg8[%c0_17, %c0_18] : memref<256x128xf32, #tpu.memory_space<vmem>>, vector<256x128xf32>
    tpu.vector_store %arg8[%c0_17, %c0_18], %22 {strides = array<i32>} : memref<256x128xf32, #tpu.memory_space<vmem>>, vector<256x128xf32>,
    return
  }
  func.func @transform_0(%arg0: i32) -> (i32, i32) {
    %c0_i32 = arith.constant 0 : i32
    %c0_i32_0 = arith.constant 0 : i32
    return %arg0, %c0_i32 : i32, i32
  }
  func.func @transform_1(%arg0: i32) -> (i32, i32) {
    %c0_i32 = arith.constant 0 : i32
    %c0_i32_0 = arith.constant 0 : i32
    %c0_i32_1 = arith.constant 0 : i32
    return %c0_i32, %c0_i32_0 : i32, i32
  }
  func.func @transform_2(%arg0: i32) -> (i32, i32) {
    %c0_i32 = arith.constant 0 : i32
    %c0_i32_0 = arith.constant 0 : i32
    %c0_i32_1 = arith.constant 0 : i32
    return %c0_i32, %c0_i32_0 : i32, i32
  }
  func.func @transform_3(%arg0: i32) -> (i32, i32) {
    %c0_i32 = arith.constant 0 : i32
    %c0_i32_0 = arith.constant 0 : i32
    %c0_i32_1 = arith.constant 0 : i32
    return %c0_i32, %c0_i32_0 : i32, i32
  }
  func.func @transform_4(%arg0: i32) -> (i32, i32) {
    %c0_i32 = arith.constant 0 : i32
    %c0_i32_0 = arith.constant 0 : i32
    %c0_i32_1 = arith.constant 0 : i32
    return %c0_i32, %c0_i32_0 : i32, i32
  }
  func.func @transform_5(%arg0: i32) -> (i32, i32) {
    %c0_i32 = arith.constant 0 : i32
    %c0_i32_0 = arith.constant 0 : i32
    %c0_i32_1 = arith.constant 0 : i32
    return %c0_i32, %c0_i32_0 : i32, i32
  }
  func.func @transform_6(%arg0: i32) -> (i32, i32) {
    %c0_i32 = arith.constant 0 : i32
    %c0_i32_0 = arith.constant 0 : i32
    %c0_i32_1 = arith.constant 0 : i32
    return %c0_i32, %c0_i32_0 : i32, i32
  }
  func.func @transform_7(%arg0: i32) -> (i32, i32) {
    %c0_i32 = arith.constant 0 : i32
    %c0_i32_0 = arith.constant 0 : i32
    return %arg0, %c0_i32 : i32, i32
  }
}

</mosaic_0001>

<llo_original>
// kernel: _forward_impl.1
$region0: #{_forward_impl.1}
  #allocation0 [shape = 'u32[]', space=smem, size = 0x4, offset = 0x4, fixed_abs, tag = 'smem constant byte address 0x4 - core index']
  #allocation1 [shape = 'u32[72,128]{1,0:T(1,128)}', space=vmem, size = 0x9000, scoped, tag = 'internal scratch']
  %s0 = inlined_call_operand.vmem [shape: f32[256,64], index: 0, kind: input, shape index: {}]
  %s1 = inlined_call_operand.vmem [shape: bf16[64,128], index: 1, kind: input, shape index: {}]
  %s2 = inlined_call_operand.vmem [shape: f32[1,128], index: 2, kind: input, shape index: {}]
  %s3 = inlined_call_operand.vmem [shape: bf16[128,128], index: 3, kind: input, shape index: {}]
  %s4 = inlined_call_operand.vmem [shape: f32[1,128], index: 4, kind: input, shape index: {}]
  %s5 = inlined_call_operand.vmem [shape: bf16[128,128], index: 5, kind: input, shape index: {}]
  %s6 = inlined_call_operand.vmem [shape: f32[1,128], index: 6, kind: input, shape index: {}]
  %s7 = inlined_call_operand.vmem [shape: f32[256,128], index: 7, kind: output, shape index: {}]
  %s8 = sld [smem:[#allocation0]]
  $region38: #{_forward_impl.1} parent=0
    _
  %s10 = ssub.s32 1, %s8
  %s11 = scalar_select 0, %s10, %s8
  // Predicated region
  $region2: #{_forward_impl.1} parent=0 // pred_check
    _
  $region3: #{_forward_impl.1} parent=0 // pred_check_branch
    %13 = sbr.rel (0) target = $region5
  $region4: #{_forward_impl.1} parent=0 // pred_region
    _
  $region5: #{_forward_impl.1} parent=0 // pred_fallthru
    _
  // Predicated region
  $region6: #{_forward_impl.1} parent=0 // pred_check
    _
  $region7: #{_forward_impl.1} parent=0 // pred_check_branch
    %15 = sbr.rel (0) target = $region9
  $region8: #{_forward_impl.1} parent=0 // pred_region
    _
  $region9: #{_forward_impl.1} parent=0 // pred_fallthru
    _
  // Predicated region
  $region10: #{_forward_impl.1} parent=0 // pred_check
    _
  $region11: #{_forward_impl.1} parent=0 // pred_check_branch
    %17 = sbr.rel (0) target = $region13
  $region12: #{_forward_impl.1} parent=0 // pred_region
    _
  $region13: #{_forward_impl.1} parent=0 // pred_fallthru
    _
  // Predicated region
  $region14: #{_forward_impl.1} parent=0 // pred_check
    _
  $region15: #{_forward_impl.1} parent=0 // pred_check_branch
    %19 = sbr.rel (0) target = $region17
  $region16: #{_forward_impl.1} parent=0 // pred_region
    _
  $region17: #{_forward_impl.1} parent=0 // pred_fallthru
    _
  // Predicated region
  $region18: #{_forward_impl.1} parent=0 // pred_check
    _
  $region19: #{_forward_impl.1} parent=0 // pred_check_branch
    %21 = sbr.rel (0) target = $region21
  $region20: #{_forward_impl.1} parent=0 // pred_region
    _
  $region21: #{_forward_impl.1} parent=0 // pred_fallthru
    _
  // Predicated region
  $region22: #{_forward_impl.1} parent=0 // pred_check
    _
  $region23: #{_forward_impl.1} parent=0 // pred_check_branch
    %23 = sbr.rel (0) target = $region25
  $region24: #{_forward_impl.1} parent=0 // pred_region
    _
  $region25: #{_forward_impl.1} parent=0 // pred_fallthru
    _
  // Predicated region
  $region26: #{_forward_impl.1} parent=0 // pred_check
    _
  $region27: #{_forward_impl.1} parent=0 // pred_check_branch
    %25 = sbr.rel (0) target = $region29
  $region28: #{_forward_impl.1} parent=0 // pred_region
    _
  $region29: #{_forward_impl.1} parent=0 // pred_fallthru
    _
  %v27 = vld [vmem:[%s0] sm:$0xff]
  %v28 = vld [vmem:[%s0 + $0x8] sm:$0xff]
  %v29 = vld [vmem:[%s0 + $0x10] sm:$0xff]
  %v30 = vld [vmem:[%s0 + $0x18] sm:$0xff]
  %v31 = vld [vmem:[%s0 + $0x20] sm:$0xff]
  %v32 = vld [vmem:[%s0 + $0x28] sm:$0xff]
  %v33 = vld [vmem:[%s0 + $0x30] sm:$0xff]
  %v34 = vld [vmem:[%s0 + $0x38] sm:$0xff]
  %v35 = vld [vmem:[%s0 + $0x40] sm:$0xff]
  %v36 = vld [vmem:[%s0 + $0x48] sm:$0xff]
  %v37 = vld [vmem:[%s0 + $0x50] sm:$0xff]
  %v38 = vld [vmem:[%s0 + $0x58] sm:$0xff]
  %v39 = vld [vmem:[%s0 + $0x60] sm:$0xff]
  %v40 = vld [vmem:[%s0 + $0x68] sm:$0xff]
  %v41 = vld [vmem:[%s0 + $0x70] sm:$0xff]
  %v42 = vld [vmem:[%s0 + $0x78] sm:$0xff]
  %v43 = vld [vmem:[%s0 + $0x80] sm:$0xff]
  %v44 = vld [vmem:[%s0 + $0x88] sm:$0xff]
  %v45 = vld [vmem:[%s0 + $0x90] sm:$0xff]
  %v46 = vld [vmem:[%s0 + $0x98] sm:$0xff]
  %v47 = vld [vmem:[%s0 + $0xa0] sm:$0xff]
  %v48 = vld [vmem:[%s0 + $0xa8] sm:$0xff]
  %v49 = vld [vmem:[%s0 + $0xb0] sm:$0xff]
  %v50 = vld [vmem:[%s0 + $0xb8] sm:$0xff]
  %v51 = vld [vmem:[%s0 + $0xc0] sm:$0xff]
  %v52 = vld [vmem:[%s0 + $0xc8] sm:$0xff]
  %v53 = vld [vmem:[%s0 + $0xd0] sm:$0xff]
  %v54 = vld [vmem:[%s0 + $0xd8] sm:$0xff]
  %v55 = vld [vmem:[%s0 + $0xe0] sm:$0xff]
  %v56 = vld [vmem:[%s0 + $0xe8] sm:$0xff]
  %v57 = vld [vmem:[%s0 + $0xf0] sm:$0xff]
  %v58 = vld [vmem:[%s0 + $0xf8] sm:$0xff]
  %v59 = vpack.c.bf16 %v28, %v27
  %v60 = vpack.c.bf16 %v30, %v29
  %v61 = vpack.c.bf16 %v32, %v31
  %v62 = vpack.c.bf16 %v34, %v33
  %v63 = vpack.c.bf16 %v36, %v35
  %v64 = vpack.c.bf16 %v38, %v37
  %v65 = vpack.c.bf16 %v40, %v39
  %v66 = vpack.c.bf16 %v42, %v41
  %v67 = vpack.c.bf16 %v44, %v43
  %v68 = vpack.c.bf16 %v46, %v45
  %v69 = vpack.c.bf16 %v48, %v47
  %v70 = vpack.c.bf16 %v50, %v49
  %v71 = vpack.c.bf16 %v52, %v51
  %v72 = vpack.c.bf16 %v54, %v53
  %v73 = vpack.c.bf16 %v56, %v55
  %v74 = vpack.c.bf16 %v58, %v57
  %v75 = vld [vmem:[%s1] sm:$0xf]
  %v76 = vld [vmem:[%s1 + $0x4] sm:$0xf]
  %v77 = vld [vmem:[%s1 + $0x8] sm:$0xf]
  %v78 = vld [vmem:[%s1 + $0xc] sm:$0xf]
  %v79 = vld [vmem:[%s1 + $0x10] sm:$0xf]
  %v80 = vld [vmem:[%s1 + $0x14] sm:$0xf]
  %v81 = vld [vmem:[%s1 + $0x18] sm:$0xf]
  %v82 = vld [vmem:[%s1 + $0x1c] sm:$0xf]
  %v83 = vld [vmem:[%s2] sm:$0x1]
  %v85 = vperm.slane %v83, 0
  %v95 = vunpack.c.l.b16 %v75
  %v96 = vunpack.c.l.b16 %v76
  %v97 = vunpack.c.l.b16 %v77
  %v98 = vunpack.c.l.b16 %v78
  %v99 = vunpack.c.l.b16 %v79
  %v100 = vunpack.c.l.b16 %v80
  %v101 = vunpack.c.l.b16 %v81
  %v102 = vunpack.c.l.b16 %v82
  %v103 = vpack.c.b16 %v96, %v95
  %v104 = vpack.c.b16 %v98, %v97
  %v105 = vpack.c.b16 %v100, %v99
  %v106 = vpack.c.b16 %v102, %v101
  %vm111 = vcmask 523264
  %v113 = vsel %vm111, %v59, 0
  %v116 = vsel %vm111, %v60, 0
  %v119 = vsel %vm111, %v61, 0
  %v122 = vsel %vm111, %v62, 0
  %v125 = vsel %vm111, %v63, 0
  %v128 = vsel %vm111, %v64, 0
  %v131 = vsel %vm111, %v65, 0
  %v134 = vsel %vm111, %v66, 0
  %v137 = vsel %vm111, %v67, 0
  %v140 = vsel %vm111, %v68, 0
  %v143 = vsel %vm111, %v69, 0
  %v146 = vsel %vm111, %v70, 0
  %v149 = vsel %vm111, %v71, 0
  %v152 = vsel %vm111, %v72, 0
  %v155 = vsel %vm111, %v73, 0
  %v158 = vsel %vm111, %v74, 0
  %160 = vmatpush.bf16.msra.mxu0 0
  %161 = vmatpush.bf16.msra.mxu0 0
  %162 = vmatpush.bf16.msra.mxu0 0
  %163 = vmatpush.bf16.msra.mxu0 0
  %164 = vmatpush.bf16.msra.mxu0 %v106
  %165 = vmatpush.bf16.msra.mxu0 %v105
  %166 = vmatpush.bf16.msra.mxu0 %v104
  %167 = vmatpush.bf16.msra.mxu0 %v103
  %168 = vmatmul.bf16.gmra.mxu0 %v113
  %v169 = vpop.f32.mrf.mxu0
  %v170 = vadd.f32 %v85, %v169
  %v171 = vpop.f32.mrf.mxu0
  %v172 = vadd.f32 %v85, %v171
  %173 = vmatmul.bf16.gmra.mxu0 %v116
  %v174 = vpop.f32.mrf.mxu0
  %v175 = vadd.f32 %v85, %v174
  %v176 = vpop.f32.mrf.mxu0
  %v177 = vadd.f32 %v85, %v176
  %178 = vmatmul.bf16.gmra.mxu0 %v119
  %v179 = vpop.f32.mrf.mxu0
  %v180 = vadd.f32 %v85, %v179
  %v181 = vpop.f32.mrf.mxu0
  %v182 = vadd.f32 %v85, %v181
  %183 = vmatmul.bf16.gmra.mxu0 %v122
  %v184 = vpop.f32.mrf.mxu0
  %v185 = vadd.f32 %v85, %v184
  %v186 = vpop.f32.mrf.mxu0
  %v187 = vadd.f32 %v85, %v186
  %188 = vmatmul.bf16.gmra.mxu0 %v125
  %v189 = vpop.f32.mrf.mxu0
  %v190 = vadd.f32 %v85, %v189
  %v191 = vpop.f32.mrf.mxu0
  %v192 = vadd.f32 %v85, %v191
  %193 = vmatmul.bf16.gmra.mxu0 %v128
  %v194 = vpop.f32.mrf.mxu0
  %v195 = vadd.f32 %v85, %v194
  %v196 = vpop.f32.mrf.mxu0
  %v197 = vadd.f32 %v85, %v196
  %198 = vmatmul.bf16.gmra.mxu0 %v131
  %v199 = vpop.f32.mrf.mxu0
  %v200 = vadd.f32 %v85, %v199
  %v201 = vpop.f32.mrf.mxu0
  %v202 = vadd.f32 %v85, %v201
  %203 = vmatmul.bf16.gmra.mxu0 %v134
  %v204 = vpop.f32.mrf.mxu0
  %v205 = vadd.f32 %v85, %v204
  %v206 = vpop.f32.mrf.mxu0
  %v207 = vadd.f32 %v85, %v206
  %208 = vmatmul.bf16.gmra.mxu0 %v137
  %v209 = vpop.f32.mrf.mxu0
  %v210 = vadd.f32 %v85, %v209
  %v211 = vpop.f32.mrf.mxu0
  %v212 = vadd.f32 %v85, %v211
  %213 = vmatmul.bf16.gmra.mxu0 %v140
  %v214 = vpop.f32.mrf.mxu0
  %v215 = vadd.f32 %v85, %v214
  %v216 = vpop.f32.mrf.mxu0
  %v217 = vadd.f32 %v85, %v216
  %218 = vmatmul.bf16.gmra.mxu0 %v143
  %v219 = vpop.f32.mrf.mxu0
  %v220 = vadd.f32 %v85, %v219
  %v221 = vpop.f32.mrf.mxu0
  %v222 = vadd.f32 %v85, %v221
  %223 = vmatmul.bf16.gmra.mxu0 %v146
  %v224 = vpop.f32.mrf.mxu0
  %v225 = vadd.f32 %v85, %v224
  %v226 = vpop.f32.mrf.mxu0
  %v227 = vadd.f32 %v85, %v226
  %228 = vmatmul.bf16.gmra.mxu0 %v149
  %v229 = vpop.f32.mrf.mxu0
  %v230 = vadd.f32 %v85, %v229
  %v231 = vpop.f32.mrf.mxu0
  %v232 = vadd.f32 %v85, %v231
  %233 = vmatmul.bf16.gmra.mxu0 %v152
  %v234 = vpop.f32.mrf.mxu0
  %v235 = vadd.f32 %v85, %v234
  %v236 = vpop.f32.mrf.mxu0
  %v237 = vadd.f32 %v85, %v236
  %238 = vmatmul.bf16.gmra.mxu0 %v155
  %v239 = vpop.f32.mrf.mxu0
  %v240 = vadd.f32 %v85, %v239
  %v241 = vpop.f32.mrf.mxu0
  %v242 = vadd.f32 %v85, %v241
  %243 = vmatmul.bf16.gmra.mxu0 %v158
  %v244 = vpop.f32.mrf.mxu0
  %v245 = vadd.f32 %v85, %v244
  %v246 = vpop.f32.mrf.mxu0
  %v247 = vadd.f32 %v85, %v246
  %248 = vdwg.mxu0
  %v249 = vmax.f32 %v170, 0.0
  %v250 = vmax.f32 %v172, 0.0
  %v251 = vmax.f32 %v175, 0.0
  %v252 = vmax.f32 %v177, 0.0
  %v253 = vmax.f32 %v180, 0.0
  %v254 = vmax.f32 %v182, 0.0
  %v255 = vmax.f32 %v185, 0.0
  %v256 = vmax.f32 %v187, 0.0
  %v257 = vmax.f32 %v190, 0.0
  %v258 = vmax.f32 %v192, 0.0
  %v259 = vmax.f32 %v195, 0.0
  %v260 = vmax.f32 %v197, 0.0
  %v261 = vmax.f32 %v200, 0.0
  %v262 = vmax.f32 %v202, 0.0
  %v263 = vmax.f32 %v205, 0.0
  %v264 = vmax.f32 %v207, 0.0
  %v265 = vmax.f32 %v210, 0.0
  %v266 = vmax.f32 %v212, 0.0
  %v267 = vmax.f32 %v215, 0.0
  %v268 = vmax.f32 %v217, 0.0
  %v269 = vmax.f32 %v220, 0.0
  %v270 = vmax.f32 %v222, 0.0
  %v271 = vmax.f32 %v225, 0.0
  %v272 = vmax.f32 %v227, 0.0
  %v273 = vmax.f32 %v230, 0.0
  %v274 = vmax.f32 %v232, 0.0
  %v275 = vmax.f32 %v235, 0.0
  %v276 = vmax.f32 %v237, 0.0
  %v277 = vmax.f32 %v240, 0.0
  %v278 = vmax.f32 %v242, 0.0
  %v279 = vmax.f32 %v245, 0.0
  %v280 = vmax.f32 %v247, 0.0
  %v281 = vpack.c.bf16 %v250, %v249
  %v282 = vpack.c.bf16 %v252, %v251
  %v283 = vpack.c.bf16 %v254, %v253
  %v284 = vpack.c.bf16 %v256, %v255
  %v285 = vpack.c.bf16 %v258, %v257
  %v286 = vpack.c.bf16 %v260, %v259
  %v287 = vpack.c.bf16 %v262, %v261
  %v288 = vpack.c.bf16 %v264, %v263
  %v289 = vpack.c.bf16 %v266, %v265
  %v290 = vpack.c.bf16 %v268, %v267
  %v291 = vpack.c.bf16 %v270, %v269
  %v292 = vpack.c.bf16 %v272, %v271
  %v293 = vpack.c.bf16 %v274, %v273
  %v294 = vpack.c.bf16 %v276, %v275
  %v295 = vpack.c.bf16 %v278, %v277
  %v296 = vpack.c.bf16 %v280, %v279
  %v297 = vld [vmem:[%s3] sm:$0xf]
  %v298 = vld [vmem:[%s3 + $0x4] sm:$0xf]
  %v299 = vld [vmem:[%s3 + $0x8] sm:$0xf]
  %v300 = vld [vmem:[%s3 + $0xc] sm:$0xf]
  %v301 = vld [vmem:[%s3 + $0x10] sm:$0xf]
  %v302 = vld [vmem:[%s3 + $0x14] sm:$0xf]
  %v303 = vld [vmem:[%s3 + $0x18] sm:$0xf]
  %v304 = vld [vmem:[%s3 + $0x1c] sm:$0xf]
  %v305 = vld [vmem:[%s3 + $0x20] sm:$0xf]
  %v306 = vld [vmem:[%s3 + $0x24] sm:$0xf]
  %v307 = vld [vmem:[%s3 + $0x28] sm:$0xf]
  %v308 = vld [vmem:[%s3 + $0x2c] sm:$0xf]
  %v309 = vld [vmem:[%s3 + $0x30] sm:$0xf]
  %v310 = vld [vmem:[%s3 + $0x34] sm:$0xf]
  %v311 = vld [vmem:[%s3 + $0x38] sm:$0xf]
  %v312 = vld [vmem:[%s3 + $0x3c] sm:$0xf]
  %v313 = vld [vmem:[%s4] sm:$0x1]
  %v315 = vperm.slane %v313, 0
  %v333 = vunpack.c.l.b16 %v297
  %v334 = vunpack.c.l.b16 %v298
  %v335 = vunpack.c.l.b16 %v299
  %v336 = vunpack.c.l.b16 %v300
  %v337 = vunpack.c.l.b16 %v301
  %v338 = vunpack.c.l.b16 %v302
  %v339 = vunpack.c.l.b16 %v303
  %v340 = vunpack.c.l.b16 %v304
  %v341 = vunpack.c.l.b16 %v305
  %v342 = vunpack.c.l.b16 %v306
  %v343 = vunpack.c.l.b16 %v307
  %v344 = vunpack.c.l.b16 %v308
  %v345 = vunpack.c.l.b16 %v309
  %v346 = vunpack.c.l.b16 %v310
  %v347 = vunpack.c.l.b16 %v311
  %v348 = vunpack.c.l.b16 %v312
  %v349 = vpack.c.b16 %v334, %v333
  %v350 = vpack.c.b16 %v336, %v335
  %v351 = vpack.c.b16 %v338, %v337
  %v352 = vpack.c.b16 %v340, %v339
  %v353 = vpack.c.b16 %v342, %v341
  %v354 = vpack.c.b16 %v344, %v343
  %v355 = vpack.c.b16 %v346, %v345
  %v356 = vpack.c.b16 %v348, %v347
  %365 = vmatpush.bf16.msra.mxu0 %v356
  %366 = vmatpush.bf16.msra.mxu0 %v355
  %367 = vmatpush.bf16.msra.mxu0 %v354
  %368 = vmatpush.bf16.msra.mxu0 %v353
  %369 = vmatpush.bf16.msra.mxu0 %v352
  %370 = vmatpush.bf16.msra.mxu0 %v351
  %371 = vmatpush.bf16.msra.mxu0 %v350
  %372 = vmatpush.bf16.msra.mxu0 %v349
  %373 = vmatmul.bf16.gmra.mxu0 %v281
  %v374 = vpop.f32.mrf.mxu0
  %v375 = vadd.f32 %v315, %v374
  %v376 = vpop.f32.mrf.mxu0
  %v377 = vadd.f32 %v315, %v376
  %378 = vmatmul.bf16.gmra.mxu0 %v282
  %v379 = vpop.f32.mrf.mxu0
  %v380 = vadd.f32 %v315, %v379
  %v381 = vpop.f32.mrf.mxu0
  %v382 = vadd.f32 %v315, %v381
  %383 = vmatmul.bf16.gmra.mxu0 %v283
  %v384 = vpop.f32.mrf.mxu0
  %v385 = vadd.f32 %v315, %v384
  %v386 = vpop.f32.mrf.mxu0
  %v387 = vadd.f32 %v315, %v386
  %388 = vmatmul.bf16.gmra.mxu0 %v284
  %v389 = vpop.f32.mrf.mxu0
  %v390 = vadd.f32 %v315, %v389
  %v391 = vpop.f32.mrf.mxu0
  %v392 = vadd.f32 %v315, %v391
  %393 = vmatmul.bf16.gmra.mxu0 %v285
  %v394 = vpop.f32.mrf.mxu0
  %v395 = vadd.f32 %v315, %v394
  %v396 = vpop.f32.mrf.mxu0
  %v397 = vadd.f32 %v315, %v396
  %398 = vmatmul.bf16.gmra.mxu0 %v286
  %v399 = vpop.f32.mrf.mxu0
  %v400 = vadd.f32 %v315, %v399
  %v401 = vpop.f32.mrf.mxu0
  %v402 = vadd.f32 %v315, %v401
  %403 = vmatmul.bf16.gmra.mxu0 %v287
  %v404 = vpop.f32.mrf.mxu0
  %v405 = vadd.f32 %v315, %v404
  %v406 = vpop.f32.mrf.mxu0
  %v407 = vadd.f32 %v315, %v406
  %408 = vmatmul.bf16.gmra.mxu0 %v288
  %v409 = vpop.f32.mrf.mxu0
  %v410 = vadd.f32 %v315, %v409
  %v411 = vpop.f32.mrf.mxu0
  %v412 = vadd.f32 %v315, %v411
  %413 = vmatmul.bf16.gmra.mxu0 %v289
  %v414 = vpop.f32.mrf.mxu0
  %v415 = vadd.f32 %v315, %v414
  %v416 = vpop.f32.mrf.mxu0
  %v417 = vadd.f32 %v315, %v416
  %418 = vmatmul.bf16.gmra.mxu0 %v290
  %v419 = vpop.f32.mrf.mxu0
  %v420 = vadd.f32 %v315, %v419
  %v421 = vpop.f32.mrf.mxu0
  %v422 = vadd.f32 %v315, %v421
  %423 = vmatmul.bf16.gmra.mxu0 %v291
  %v424 = vpop.f32.mrf.mxu0
  %v425 = vadd.f32 %v315, %v424
  %v426 = vpop.f32.mrf.mxu0
  %v427 = vadd.f32 %v315, %v426
  %428 = vmatmul.bf16.gmra.mxu0 %v292
  %v429 = vpop.f32.mrf.mxu0
  %v430 = vadd.f32 %v315, %v429
  %v431 = vpop.f32.mrf.mxu0
  %v432 = vadd.f32 %v315, %v431
  %433 = vmatmul.bf16.gmra.mxu0 %v293
  %v434 = vpop.f32.mrf.mxu0
  %v435 = vadd.f32 %v315, %v434
  %v436 = vpop.f32.mrf.mxu0
  %v437 = vadd.f32 %v315, %v436
  %438 = vmatmul.bf16.gmra.mxu0 %v294
  %v439 = vpop.f32.mrf.mxu0
  %v440 = vadd.f32 %v315, %v439
  %v441 = vpop.f32.mrf.mxu0
  %v442 = vadd.f32 %v315, %v441
  %443 = vmatmul.bf16.gmra.mxu0 %v295
  %v444 = vpop.f32.mrf.mxu0
  %v445 = vadd.f32 %v315, %v444
  %v446 = vpop.f32.mrf.mxu0
  %v447 = vadd.f32 %v315, %v446
  %448 = vmatmul.bf16.gmra.mxu0 %v296
  %v449 = vpop.f32.mrf.mxu0
  %v450 = vadd.f32 %v315, %v449
  %v451 = vpop.f32.mrf.mxu0
  %v452 = vadd.f32 %v315, %v451
  %453 = vdwg.mxu0
  %v454 = vmax.f32 %v375, 0.0
  %v455 = vmax.f32 %v377, 0.0
  %v456 = vmax.f32 %v380, 0.0
  %v457 = vmax.f32 %v382, 0.0
  %v458 = vmax.f32 %v385, 0.0
  %v459 = vmax.f32 %v387, 0.0
  %v460 = vmax.f32 %v390, 0.0
  %v461 = vmax.f32 %v392, 0.0
  %v462 = vmax.f32 %v395, 0.0
  %v463 = vmax.f32 %v397, 0.0
  %v464 = vmax.f32 %v400, 0.0
  %v465 = vmax.f32 %v402, 0.0
  %v466 = vmax.f32 %v405, 0.0
  %v467 = vmax.f32 %v407, 0.0
  %v468 = vmax.f32 %v410, 0.0
  %v469 = vmax.f32 %v412, 0.0
  %v470 = vmax.f32 %v415, 0.0
  %v471 = vmax.f32 %v417, 0.0
  %v472 = vmax.f32 %v420, 0.0
  %v473 = vmax.f32 %v422, 0.0
  %v474 = vmax.f32 %v425, 0.0
  %v475 = vmax.f32 %v427, 0.0
  %v476 = vmax.f32 %v430, 0.0
  %v477 = vmax.f32 %v432, 0.0
  %v478 = vmax.f32 %v435, 0.0
  %v479 = vmax.f32 %v437, 0.0
  %v480 = vmax.f32 %v440, 0.0
  %v481 = vmax.f32 %v442, 0.0
  %v482 = vmax.f32 %v445, 0.0
  %v483 = vmax.f32 %v447, 0.0
  %v484 = vmax.f32 %v450, 0.0
  %v485 = vmax.f32 %v452, 0.0
  %v486 = vpack.c.bf16 %v455, %v454
  %v487 = vpack.c.bf16 %v457, %v456
  %v488 = vpack.c.bf16 %v459, %v458
  %v489 = vpack.c.bf16 %v461, %v460
  %v490 = vpack.c.bf16 %v463, %v462
  %v491 = vpack.c.bf16 %v465, %v464
  %v492 = vpack.c.bf16 %v467, %v466
  %v493 = vpack.c.bf16 %v469, %v468
  %v494 = vpack.c.bf16 %v471, %v470
  %v495 = vpack.c.bf16 %v473, %v472
  %v496 = vpack.c.bf16 %v475, %v474
  %v497 = vpack.c.bf16 %v477, %v476
  %v498 = vpack.c.bf16 %v479, %v478
  %v499 = vpack.c.bf16 %v481, %v480
  %v500 = vpack.c.bf16 %v483, %v482
  %v501 = vpack.c.bf16 %v485, %v484
  %v502 = vld [vmem:[%s5] sm:$0xf]
  %v503 = vld [vmem:[%s5 + $0x4] sm:$0xf]
  %v504 = vld [vmem:[%s5 + $0x8] sm:$0xf]
  %v505 = vld [vmem:[%s5 + $0xc] sm:$0xf]
  %v506 = vld [vmem:[%s5 + $0x10] sm:$0xf]
  %v507 = vld [vmem:[%s5 + $0x14] sm:$0xf]
  %v508 = vld [vmem:[%s5 + $0x18] sm:$0xf]
  %v509 = vld [vmem:[%s5 + $0x1c] sm:$0xf]
  %v510 = vld [vmem:[%s5 + $0x20] sm:$0xf]
  %v511 = vld [vmem:[%s5 + $0x24] sm:$0xf]
  %v512 = vld [vmem:[%s5 + $0x28] sm:$0xf]
  %v513 = vld [vmem:[%s5 + $0x2c] sm:$0xf]
  %v514 = vld [vmem:[%s5 + $0x30] sm:$0xf]
  %v515 = vld [vmem:[%s5 + $0x34] sm:$0xf]
  %v516 = vld [vmem:[%s5 + $0x38] sm:$0xf]
  %v517 = vld [vmem:[%s5 + $0x3c] sm:$0xf]
  %v518 = vld [vmem:[%s6] sm:$0x1]
  %v520 = vperm.slane %v518, 0
  %v538 = vunpack.c.l.b16 %v502
  %v539 = vunpack.c.l.b16 %v503
  %v540 = vunpack.c.l.b16 %v504
  %v541 = vunpack.c.l.b16 %v505
  %v542 = vunpack.c.l.b16 %v506
  %v543 = vunpack.c.l.b16 %v507
  %v544 = vunpack.c.l.b16 %v508
  %v545 = vunpack.c.l.b16 %v509
  %v546 = vunpack.c.l.b16 %v510
  %v547 = vunpack.c.l.b16 %v511
  %v548 = vunpack.c.l.b16 %v512
  %v549 = vunpack.c.l.b16 %v513
  %v550 = vunpack.c.l.b16 %v514
  %v551 = vunpack.c.l.b16 %v515
  %v552 = vunpack.c.l.b16 %v516
  %v553 = vunpack.c.l.b16 %v517
  %v554 = vpack.c.b16 %v539, %v538
  %v555 = vpack.c.b16 %v541, %v540
  %v556 = vpack.c.b16 %v543, %v542
  %v557 = vpack.c.b16 %v545, %v544
  %v558 = vpack.c.b16 %v547, %v546
  %v559 = vpack.c.b16 %v549, %v548
  %v560 = vpack.c.b16 %v551, %v550
  %v561 = vpack.c.b16 %v553, %v552
  %570 = vmatpush.bf16.msra.mxu0 %v561
  %571 = vmatpush.bf16.msra.mxu0 %v560
  %572 = vmatpush.bf16.msra.mxu0 %v559
  %573 = vmatpush.bf16.msra.mxu0 %v558
  %574 = vmatpush.bf16.msra.mxu0 %v557
  %575 = vmatpush.bf16.msra.mxu0 %v556
  %576 = vmatpush.bf16.msra.mxu0 %v555
  %577 = vmatpush.bf16.msra.mxu0 %v554
  %578 = vmatmul.bf16.gmra.mxu0 %v486
  %v579 = vpop.f32.mrf.mxu0
  %v580 = vadd.f32 %v520, %v579
  %v581 = vpop.f32.mrf.mxu0
  %v582 = vadd.f32 %v520, %v581
  %583 = vmatmul.bf16.gmra.mxu0 %v487
  %v584 = vpop.f32.mrf.mxu0
  %v585 = vadd.f32 %v520, %v584
  %v586 = vpop.f32.mrf.mxu0
  %v587 = vadd.f32 %v520, %v586
  %588 = vmatmul.bf16.gmra.mxu0 %v488
  %v589 = vpop.f32.mrf.mxu0
  %v590 = vadd.f32 %v520, %v589
  %v591 = vpop.f32.mrf.mxu0
  %v592 = vadd.f32 %v520, %v591
  %593 = vmatmul.bf16.gmra.mxu0 %v489
  %v594 = vpop.f32.mrf.mxu0
  %v595 = vadd.f32 %v520, %v594
  %v596 = vpop.f32.mrf.mxu0
  %v597 = vadd.f32 %v520, %v596
  %598 = vmatmul.bf16.gmra.mxu0 %v490
  %v599 = vpop.f32.mrf.mxu0
  %v600 = vadd.f32 %v520, %v599
  %v601 = vpop.f32.mrf.mxu0
  %v602 = vadd.f32 %v520, %v601
  %603 = vmatmul.bf16.gmra.mxu0 %v491
  %v604 = vpop.f32.mrf.mxu0
  %v605 = vadd.f32 %v520, %v604
  %v606 = vpop.f32.mrf.mxu0
  %v607 = vadd.f32 %v520, %v606
  %608 = vmatmul.bf16.gmra.mxu0 %v492
  %v609 = vpop.f32.mrf.mxu0
  %v610 = vadd.f32 %v520, %v609
  %v611 = vpop.f32.mrf.mxu0
  %v612 = vadd.f32 %v520, %v611
  %613 = vmatmul.bf16.gmra.mxu0 %v493
  %v614 = vpop.f32.mrf.mxu0
  %v615 = vadd.f32 %v520, %v614
  %v616 = vpop.f32.mrf.mxu0
  %v617 = vadd.f32 %v520, %v616
  %618 = vmatmul.bf16.gmra.mxu0 %v494
  %v619 = vpop.f32.mrf.mxu0
  %v620 = vadd.f32 %v520, %v619
  %v621 = vpop.f32.mrf.mxu0
  %v622 = vadd.f32 %v520, %v621
  %623 = vmatmul.bf16.gmra.mxu0 %v495
  %v624 = vpop.f32.mrf.mxu0
  %v625 = vadd.f32 %v520, %v624
  %v626 = vpop.f32.mrf.mxu0
  %v627 = vadd.f32 %v520, %v626
  %628 = vmatmul.bf16.gmra.mxu0 %v496
  %v629 = vpop.f32.mrf.mxu0
  %v630 = vadd.f32 %v520, %v629
  %v631 = vpop.f32.mrf.mxu0
  %v632 = vadd.f32 %v520, %v631
  %633 = vmatmul.bf16.gmra.mxu0 %v497
  %v634 = vpop.f32.mrf.mxu0
  %v635 = vadd.f32 %v520, %v634
  %v636 = vpop.f32.mrf.mxu0
  %v637 = vadd.f32 %v520, %v636
  %638 = vmatmul.bf16.gmra.mxu0 %v498
  %v639 = vpop.f32.mrf.mxu0
  %v640 = vadd.f32 %v520, %v639
  %v641 = vpop.f32.mrf.mxu0
  %v642 = vadd.f32 %v520, %v641
  %643 = vmatmul.bf16.gmra.mxu0 %v499
  %v644 = vpop.f32.mrf.mxu0
  %v645 = vadd.f32 %v520, %v644
  %v646 = vpop.f32.mrf.mxu0
  %v647 = vadd.f32 %v520, %v646
  %648 = vmatmul.bf16.gmra.mxu0 %v500
  %v649 = vpop.f32.mrf.mxu0
  %v650 = vadd.f32 %v520, %v649
  %v651 = vpop.f32.mrf.mxu0
  %v652 = vadd.f32 %v520, %v651
  %653 = vmatmul.bf16.gmra.mxu0 %v501
  %v654 = vpop.f32.mrf.mxu0
  %v655 = vadd.f32 %v520, %v654
  %v656 = vpop.f32.mrf.mxu0
  %v657 = vadd.f32 %v520, %v656
  %658 = vdwg.mxu0
  %659 = vst [vmem:[%s7] sm:$0xff] %v580
  %660 = vst [vmem:[%s7 + $0x8] sm:$0xff] %v582
  %661 = vst [vmem:[%s7 + $0x10] sm:$0xff] %v585
  %662 = vst [vmem:[%s7 + $0x18] sm:$0xff] %v587
  %663 = vst [vmem:[%s7 + $0x20] sm:$0xff] %v590
  %664 = vst [vmem:[%s7 + $0x28] sm:$0xff] %v592
  %665 = vst [vmem:[%s7 + $0x30] sm:$0xff] %v595
  %666 = vst [vmem:[%s7 + $0x38] sm:$0xff] %v597
  %667 = vst [vmem:[%s7 + $0x40] sm:$0xff] %v600
  %668 = vst [vmem:[%s7 + $0x48] sm:$0xff] %v602
  %669 = vst [vmem:[%s7 + $0x50] sm:$0xff] %v605
  %670 = vst [vmem:[%s7 + $0x58] sm:$0xff] %v607
  %671 = vst [vmem:[%s7 + $0x60] sm:$0xff] %v610
  %672 = vst [vmem:[%s7 + $0x68] sm:$0xff] %v612
  %673 = vst [vmem:[%s7 + $0x70] sm:$0xff] %v615
  %674 = vst [vmem:[%s7 + $0x78] sm:$0xff] %v617
  %675 = vst [vmem:[%s7 + $0x80] sm:$0xff] %v620
  %676 = vst [vmem:[%s7 + $0x88] sm:$0xff] %v622
  %677 = vst [vmem:[%s7 + $0x90] sm:$0xff] %v625
  %678 = vst [vmem:[%s7 + $0x98] sm:$0xff] %v627
  %679 = vst [vmem:[%s7 + $0xa0] sm:$0xff] %v630
  %680 = vst [vmem:[%s7 + $0xa8] sm:$0xff] %v632
  %681 = vst [vmem:[%s7 + $0xb0] sm:$0xff] %v635
  %682 = vst [vmem:[%s7 + $0xb8] sm:$0xff] %v637
  %683 = vst [vmem:[%s7 + $0xc0] sm:$0xff] %v640
  %684 = vst [vmem:[%s7 + $0xc8] sm:$0xff] %v642
  %685 = vst [vmem:[%s7 + $0xd0] sm:$0xff] %v645
  %686 = vst [vmem:[%s7 + $0xd8] sm:$0xff] %v647
  %687 = vst [vmem:[%s7 + $0xe0] sm:$0xff] %v650
  %688 = vst [vmem:[%s7 + $0xe8] sm:$0xff] %v652
  %689 = vst [vmem:[%s7 + $0xf0] sm:$0xff] %v655
  %690 = vst [vmem:[%s7 + $0xf8] sm:$0xff] %v657
  // Predicated region
  $region30: #{_forward_impl.1} parent=0 // pred_check
    _
  $region31: #{_forward_impl.1} parent=0 // pred_check_branch
    %692 = sbr.rel (0) target = $region33
  $region32: #{_forward_impl.1} parent=0 // pred_region
    _
  $region33: #{_forward_impl.1} parent=0 // pred_fallthru
    _
  // Predicated region
  $region34: #{_forward_impl.1} parent=0 // pred_check
    _
  $region35: #{_forward_impl.1} parent=0 // pred_check_branch
    %694 = sbr.rel (0) target = $region37
  $region36: #{_forward_impl.1} parent=0 // pred_region
    _
  $region37: #{_forward_impl.1} parent=0 // pred_fallthru
    _

</llo_original>
